<compile_context>
chip_gen: v7x
topology: tpu7x:2x2x1
jax: 0.10.0
libtpu: 0.0.40
codegen_flags: <defaults>
</compile_context>

<pallas_src>
import functools

import jax
import jax.numpy as jnp
from jax.experimental import pallas as pl
from jax.experimental.pallas import tpu as pltpu

_EPS = 1e-12  # matches F.normalize(eps=1e-12)


def _contrastive_kernel(z1_ref, z2mm_hbm, z2rows_ref, out_ref,
                        z2v_scr, diag_acc, col_acc, loss_acc, dma_sem,
                        *, tau: float, mean: bool, block_rows: int,
                        n_valid: int, n_pad: int, mm_dtype):
    i = pl.program_id(0)
    tm = block_rows
    pad = n_pad - n_valid
    inv_tau = 1.0 / tau

    # ---- once: bring the pre-normalized z2 into VMEM (single resident copy,
    # no pipeline double-buffer) and zero the carried accumulators.
    @pl.when(i == 0)
    def _init():
        cp = pltpu.make_async_copy(z2mm_hbm, z2v_scr, dma_sem)
        cp.start()
        cp.wait()
        col_acc[...] = jnp.zeros_like(col_acc)
        loss_acc[...] = jnp.zeros_like(loss_acc)

    # ---- per row tile: normalize z1 with rsqrt and fold 1/tau into it so the
    # (TM, N) strip needs no extra scaling.
    z1t = z1_ref[...].astype(jnp.float32)                           # (TM, D)
    sq = jnp.sum(z1t * z1t, axis=1, keepdims=True)
    z1n = z1t * (jax.lax.rsqrt(jnp.maximum(sq, _EPS * _EPS)) * inv_tau)

    # One MXU strip: contract the last dims of both operands (no transpose
    # materialized); bf16 operands / f32 accumulation by default.
    sim = jax.lax.dot_general(z1n.astype(mm_dtype), z2v_scr[...],
                              dimension_numbers=(((1,), (1,)), ((), ())),
                              preferred_element_type=jnp.float32)   # (TM, N_pad)
    s = jnp.exp(sim)

    row_sum = jnp.sum(s, axis=1, keepdims=True)                     # (TM, 1)
    col_acc[...] += jnp.sum(s, axis=0, keepdims=True)               # (1, N_pad)

    # Diagonal in f32 from a row-wise dot (O(TM*D); no N x N iota/masks).
    z2r = z2rows_ref[...].astype(jnp.float32)                       # (TM, D)
    diag = jnp.exp(jnp.sum(z1n * z2r, axis=1, keepdims=True))       # (TM, 1)

    start = pl.multiple_of(i * tm, tm)
    diag_acc[pl.ds(start, tm), :] = diag

    # Padded z2 columns are zero vectors -> each adds exp(0)=1 to every row sum.
    if pad:
        row_sum = row_sum - float(pad)

    # Per-tile part of 0.5*(l1+l2):  0.5*log(2*row - diag) - log(diag).
    part = 0.5 * jnp.log(2.0 * row_sum - diag) - jnp.log(diag)
    if pad:
        rid = start + jax.lax.broadcasted_iota(jnp.int32, (tm, 1), 0)
        part = jnp.where(rid < n_valid, part, 0.0)
    loss_acc[...] += jnp.sum(part)

    # ---- last tile: add the column-sum term of l2 and emit the scalar.
    @pl.when(i == pl.num_programs(0) - 1)
    def _finalize():
        d_all = diag_acc[...]                                       # (N_pad, 1)
        c_all = jnp.transpose(col_acc[...], (1, 0))                 # (N_pad, 1)
        if pad:
            c_all = c_all - float(pad)   # padded z1 rows add exp(0)=1 per column
        term = 0.5 * jnp.log(2.0 * c_all - d_all)
        if pad:
            rid = jax.lax.broadcasted_iota(jnp.int32, (n_pad, 1), 0)
            term = jnp.where(rid < n_valid, term, 0.0)
        total = loss_acc[...] + jnp.sum(term)                       # (1, 1)
        if mean:
            total = total * (1.0 / n_valid)
        out_ref[...] = total


def _pick_tiling(n: int, block_rows=None):
    """Return (tm, n_pad): row-tile size and padded row count (tm divides n_pad)."""
    if block_rows is not None:
        tm = int(block_rows)
        if tm >= n:
            return n, n
        assert tm % 8 == 0, "block_rows must be a multiple of 8"
        return tm, ((n + tm - 1) // tm) * tm
    if n <= 1024:
        return n, n                       # single strip: at most 1024*1024*4 = 4 MiB
    # Multi-tile: TM a multiple of 128 (MXU-friendly), f32 strip <= ~8 MiB.
    for tm in (512, 256, 128):
        n_pad = ((n + tm - 1) // tm) * tm
        if tm * n_pad * 4 <= 8 * 1024 * 1024:
            return tm, n_pad
    return 128, ((n + 127) // 128) * 128


def _vmem_limit_bytes(tm, n_pad, d, mm_bytes):
    resident = n_pad * d * mm_bytes                   # z2n: single VMEM copy
    tiles = 2 * 2 * tm * d * 4                        # z1 + z2-row tiles (double buffered)
    strip = 3 * tm * n_pad * 4                        # sim / exp / reduction temporaries
    accs = n_pad * 128 * 4 + 8 * n_pad * 4 + 4096     # diag (lane-padded), col, loss
    est = int(1.25 * (resident + tiles + strip + accs)) + (2 << 20)
    return max(16 * 1024 * 1024, min(est, 128 * 1024 * 1024))


def contrastive_loss(z1: jax.Array, z2: jax.Array, tau: float,
                     mean: bool = True, block_rows: int | None = None,
                     mm_dtype=jnp.bfloat16) -> jax.Array:
    assert z1.ndim == 2 and z1.shape == z2.shape
    n, d = z1.shape
    tm, n_pad = _pick_tiling(n, block_rows)
    pad = n_pad - n
    grid = (n_pad // tm,)

    # Normalize z2 once here; the kernel reuses it both for the MXU strips and
    # (in f32) for the diagonal row tiles.  Pad rows with zeros up to n_pad.
    z2f = z2.astype(jnp.float32)
    z2n = z2f * jax.lax.rsqrt(
        jnp.maximum(jnp.sum(z2f * z2f, axis=1, keepdims=True), _EPS * _EPS))
    z1p = z1
    if pad:
        z1p = jnp.pad(z1, ((0, pad), (0, 0)))
        z2n = jnp.pad(z2n, ((0, pad), (0, 0)))
    z2n_mm = z2n.astype(mm_dtype)

    kernel = functools.partial(
        _contrastive_kernel, tau=float(tau), mean=bool(mean), block_rows=tm,
        n_valid=n, n_pad=n_pad, mm_dtype=mm_dtype)

    out = pl.pallas_call(
        kernel,
        out_shape=jax.ShapeDtypeStruct((1, 1), jnp.float32),
        grid_spec=pltpu.PrefetchScalarGridSpec(
            num_scalar_prefetch=0,
            grid=grid,
            in_specs=[
                pl.BlockSpec((tm, d), lambda i: (i, 0)),   # z1 row tiles (pipelined)
                pl.BlockSpec(memory_space=pl.ANY),         # z2n (mm dtype), stays in HBM
                pl.BlockSpec((tm, d), lambda i: (i, 0)),   # z2n f32 row tiles (diag)
            ],
            out_specs=pl.BlockSpec((1, 1), lambda i: (0, 0)),
            scratch_shapes=[
                pltpu.VMEM((n_pad, d), mm_dtype),     # resident normalized z2 (1 copy)
                pltpu.VMEM((n_pad, 1), jnp.float32),  # diag S_ii
                pltpu.VMEM((1, n_pad), jnp.float32),  # column sums (carried)
                pltpu.VMEM((1, 1), jnp.float32),      # carried partial loss
                pltpu.SemaphoreType.DMA,              # one-shot z2 copy
            ],
        ),
        compiler_params=pltpu.CompilerParams(
            # col/loss accumulators are carried across the row axis.
            dimension_semantics=("arbitrary",),
            vmem_limit_bytes=_vmem_limit_bytes(tm, n_pad, d,
                                               jnp.dtype(mm_dtype).itemsize),
        ),
    )(z1p, z2n_mm, z2n)
    return out[0, 0]


def _reference(z1, z2, tau, mean=True):
    # Pure-JAX mirror of the PyTorch module, for a correctness check.
    def normalize(x):
        return x / jnp.maximum(jnp.linalg.norm(x, axis=1, keepdims=True), _EPS)

    def semi(a, b):
        s = jnp.exp(normalize(a) @ normalize(b).T / tau)
        return -jnp.log(jnp.diag(s) / (2.0 * s.sum(1) - jnp.diag(s)))

    ret = 0.5 * (semi(z1, z2) + semi(z2, z1))
    return ret.mean() if mean else ret.sum()


if __name__ == "__main__":
    key = jax.random.PRNGKey(0)
    ks = jax.random.split(key, 6)
    tau = 0.5

    # Case 1: tiny single-strip path, f32 MXU operands -> tight tolerance.
    z1 = jax.random.normal(ks[0], (8, 32), dtype=jnp.float32)
    z2 = jax.random.normal(ks[1], (8, 32), dtype=jnp.float32)
    out1 = jax.block_until_ready(
        contrastive_loss(z1, z2, tau, mean=True, mm_dtype=jnp.float32))
    ref1 = _reference(z1, z2, tau, mean=True)
    assert jnp.allclose(out1, ref1, rtol=1e-4, atol=1e-4), (out1, ref1)

    # Case 2: tiled + padded path (N=37 -> N_pad=40, grid=5), default bf16 MXU.
    z3 = jax.random.normal(ks[2], (37, 16), dtype=jnp.float32)
    z4 = jax.random.normal(ks[3], (37, 16), dtype=jnp.float32)
    out2 = jax.block_until_ready(
        contrastive_loss(z3, z4, tau, mean=False, block_rows=8))
    ref2 = _reference(z3, z4, tau, mean=False)
    assert jnp.allclose(out2, ref2, rtol=3e-2, atol=3e-2), (out2, ref2)

    # Case 3: aligned multi-tile path (TM=128, grid=2), bf16 MXU.
    z5 = jax.random.normal(ks[4], (256, 64), dtype=jnp.float32)
    z6 = jax.random.normal(ks[5], (256, 64), dtype=jnp.float32)
    out3 = jax.block_until_ready(
        contrastive_loss(z5, z6, tau, mean=True, block_rows=128))
    ref3 = _reference(z5, z6, tau, mean=True)
    assert jnp.allclose(out3, ref3, rtol=3e-2, atol=3e-2), (out3, ref3)

    print("KERNEL_OK")
</pallas_src>

<mosaic_0001>
module attributes {stable_mosaic.version = 11 : i64} {
  func.func @_contrastive_kernel(%arg0: i32, %arg1: memref<8x32xf32, #tpu.memory_space<vmem>>, %arg2: memref<8x32xf32, #tpu.memory_space<any>>, %arg3: memref<8x32xf32, #tpu.memory_space<vmem>>, %arg4: memref<1x1xf32, #tpu.memory_space<vmem>>, %arg5: memref<8x32xf32, #tpu.memory_space<vmem>>, %arg6: memref<8x1xf32, #tpu.memory_space<vmem>>, %arg7: memref<1x8xf32, #tpu.memory_space<vmem>>, %arg8: memref<1x1xf32, #tpu.memory_space<vmem>>, %arg9: memref<!tpu.dma_semaphore, #tpu.memory_space<semaphore_mem>>) attributes {dimension_semantics = [#tpu.dimension_semantics<arbitrary>], iteration_bounds = array<i64: 1>, scalar_prefetch = 0 : i64, scratch_operands = 5 : i64, tpu.core_type = #tpu.core_type<tc>, window_params = [{transform_indices = @transform_0, window_bounds = array<i64: 8, 32>}, {}, {transform_indices = @transform_2, window_bounds = array<i64: 8, 32>}, {pipeline_mode = #tpu.pipeline_mode<synchronous>, transform_indices = @transform_3, window_bounds = array<i64: 1, 1>}]} {
    %c0_i32 = arith.constant 0 : i32
    %0 = arith.cmpi eq, %arg0, %c0_i32 : i32
    %1 = arith.extui %0 : i1 to i32
    %c0_i32_0 = arith.constant 0 : i32
    %2 = arith.cmpi ne, %1, %c0_i32_0 : i32
    scf.if %2 {
      tpu.enqueue_dma source(%arg2 : memref<8x32xf32, #tpu.memory_space<any>>) target(%arg5 : memref<8x32xf32, #tpu.memory_space<vmem>>) target_semaphore(%arg9 : memref<!tpu.dma_semaphore, #tpu.memory_space<semaphore_mem>>)
      tpu.wait_dma2 semaphore(%arg9 : memref<!tpu.dma_semaphore, #tpu.memory_space<semaphore_mem>>) src(%arg2 : memref<8x32xf32, #tpu.memory_space<any>>) dst(%arg5 : memref<8x32xf32, #tpu.memory_space<vmem>>)
      %cst_26 = arith.constant 0.000000e+00 : f32
      %52 = vector.broadcast %cst_26 : f32 to vector<1x8xf32>
      %c0_27 = arith.constant 0 : index
      %c0_28 = arith.constant 0 : index
      %53 = vector.load %arg7[%c0_27, %c0_28] : memref<1x8xf32, #tpu.memory_space<vmem>>, vector<1x8xf32>
      tpu.vector_store %arg7[%c0_27, %c0_28], %52 {strides = array<i32>} : memref<1x8xf32, #tpu.memory_space<vmem>>, vector<1x8xf32>,
      %cst_29 = arith.constant 0.000000e+00 : f32
      %54 = vector.broadcast %cst_29 : f32 to vector<1x1xf32>
      %c0_30 = arith.constant 0 : index
      %c0_31 = arith.constant 0 : index
      %55 = vector.load %arg8[%c0_30, %c0_31] : memref<1x1xf32, #tpu.memory_space<vmem>>, vector<1x1xf32>
      tpu.vector_store %arg8[%c0_30, %c0_31], %54 {strides = array<i32>} : memref<1x1xf32, #tpu.memory_space<vmem>>, vector<1x1xf32>,
    } else {
    }
    %c0 = arith.constant 0 : index
    %c0_1 = arith.constant 0 : index
    %3 = vector.load %arg1[%c0, %c0_1] : memref<8x32xf32, #tpu.memory_space<vmem>>, vector<8x32xf32>
    %4 = arith.mulf %3, %3 : vector<8x32xf32>
    %cst = arith.constant dense<0.000000e+00> : vector<8xf32>
    %5 = vector.multi_reduction <add>, %4, %cst [1] : vector<8x32xf32> to vector<8xf32>
    %6 = vector.shape_cast %5 : vector<8xf32> to vector<8x1xf32>
    %cst_2 = arith.constant 1.000000e-24 : f32
    %7 = vector.broadcast %cst_2 : f32 to vector<8x1xf32>
    %8 = arith.maximumf %6, %7 : vector<8x1xf32>
    %9 = math.rsqrt %8 : vector<8x1xf32>
    %cst_3 = arith.constant 2.000000e+00 : f32
    %10 = vector.broadcast %cst_3 : f32 to vector<8x1xf32>
    %11 = arith.mulf %9, %10 : vector<8x1xf32>
    %12 = vector.broadcast %11 : vector<8x1xf32> to vector<8x32xf32>
    %13 = arith.mulf %3, %12 : vector<8x32xf32>
    %c0_4 = arith.constant 0 : index
    %c0_5 = arith.constant 0 : index
    %14 = vector.load %arg5[%c0_4, %c0_5] : memref<8x32xf32, #tpu.memory_space<vmem>>, vector<8x32xf32>
    %cst_6 = arith.constant dense<0.000000e+00> : vector<8x8xf32>
    %15 = tpu.matmul %13, %14, %cst_6 {dimension_numbers = #tpu.dot_dimension_numbers<[1], [1], [0], [0], [0, 0, 1, 0], [], []>} : vector<8x32xf32>, vector<8x32xf32>, vector<8x8xf32> -> vector<8x8xf32>
    %16 = math.exp %15 : vector<8x8xf32>
    %cst_7 = arith.constant dense<0.000000e+00> : vector<8xf32>
    %17 = vector.multi_reduction <add>, %16, %cst_7 [1] : vector<8x8xf32> to vector<8xf32>
    %18 = vector.shape_cast %17 : vector<8xf32> to vector<8x1xf32>
    %c0_8 = arith.constant 0 : index
    %c0_9 = arith.constant 0 : index
    %19 = vector.load %arg7[%c0_8, %c0_9] : memref<1x8xf32, #tpu.memory_space<vmem>>, vector<1x8xf32>
    %cst_10 = arith.constant dense<0.000000e+00> : vector<8xf32>
    %20 = vector.multi_reduction <add>, %16, %cst_10 [0] : vector<8x8xf32> to vector<8xf32>
    %21 = vector.shape_cast %20 : vector<8xf32> to vector<1x8xf32>
    %22 = arith.addf %19, %21 : vector<1x8xf32>
    %c0_11 = arith.constant 0 : index
    %c0_12 = arith.constant 0 : index
    %23 = vector.load %arg7[%c0_11, %c0_12] : memref<1x8xf32, #tpu.memory_space<vmem>>, vector<1x8xf32>
    tpu.vector_store %arg7[%c0_11, %c0_12], %22 {strides = array<i32>} : memref<1x8xf32, #tpu.memory_space<vmem>>, vector<1x8xf32>,
    %c0_13 = arith.constant 0 : index
    %c0_14 = arith.constant 0 : index
    %24 = vector.load %arg3[%c0_13, %c0_14] : memref<8x32xf32, #tpu.memory_space<vmem>>, vector<8x32xf32>
    %25 = arith.mulf %13, %24 : vector<8x32xf32>
    %cst_15 = arith.constant dense<0.000000e+00> : vector<8xf32>
    %26 = vector.multi_reduction <add>, %25, %cst_15 [1] : vector<8x32xf32> to vector<8xf32>
    %27 = vector.shape_cast %26 : vector<8xf32> to vector<8x1xf32>
    %28 = math.exp %27 : vector<8x1xf32>
    %c8_i32 = arith.constant 8 : i32
    %29 = arith.muli %arg0, %c8_i32 : i32
    %30 = tpu.assume_multiple %29, 8 : i32
    %31 = arith.index_cast %30 : i32 to index
    %c0_16 = arith.constant 0 : index
    %32 = vector.load %arg6[%31, %c0_16] : memref<8x1xf32, #tpu.memory_space<vmem>>, vector<8x1xf32>
    tpu.vector_store %arg6[%31, %c0_16], %28 {strides = array<i32>} : memref<8x1xf32, #tpu.memory_space<vmem>>, vector<8x1xf32>,
    %cst_17 = arith.constant 2.000000e+00 : f32
    %33 = vector.broadcast %cst_17 : f32 to vector<8x1xf32>
    %34 = arith.mulf %33, %18 : vector<8x1xf32>
    %35 = arith.subf %34, %28 : vector<8x1xf32>
    %36 = math.log %35 : vector<8x1xf32>
    %cst_18 = arith.constant 5.000000e-01 : f32
    %37 = vector.broadcast %cst_18 : f32 to vector<8x1xf32>
    %38 = arith.mulf %37, %36 : vector<8x1xf32>
    %39 = math.log %28 : vector<8x1xf32>
    %40 = arith.subf %38, %39 : vector<8x1xf32>
    %c0_19 = arith.constant 0 : index
    %c0_20 = arith.constant 0 : index
    %41 = vector.load %arg8[%c0_19, %c0_20] : memref<1x1xf32, #tpu.memory_space<vmem>>, vector<1x1xf32>
    %42 = vector.shape_cast %40 : vector<8x1xf32> to vector<1x8x1xf32>
    %cst_21 = arith.constant dense<0.000000e+00> : vector<1xf32>
    %43 = vector.multi_reduction <add>, %42, %cst_21 [1, 2] : vector<1x8x1xf32> to vector<1xf32>
    %44 = vector.shape_cast %43 : vector<1xf32> to vector<1x1x1xf32>
    %45 = vector.extract %44[0, 0, 0] : f32 from vector<1x1x1xf32>
    %46 = vector.broadcast %45 : f32 to vector<1x1xf32>
    %47 = arith.addf %41, %46 : vector<1x1xf32>
    %c0_22 = arith.constant 0 : index
    %c0_23 = arith.constant 0 : index
    %48 = vector.load %arg8[%c0_22, %c0_23] : memref<1x1xf32, #tpu.memory_space<vmem>>, vector<1x1xf32>
    tpu.vector_store %arg8[%c0_22, %c0_23], %47 {strides = array<i32>} : memref<1x1xf32, #tpu.memory_space<vmem>>, vector<1x1xf32>,
    %c0_i32_24 = arith.constant 0 : i32
    %49 = arith.cmpi eq, %arg0, %c0_i32_24 : i32
    %50 = arith.extui %49 : i1 to i32
    %c0_i32_25 = arith.constant 0 : i32
    %51 = arith.cmpi ne, %50, %c0_i32_25 : i32
    scf.if %51 {
      %c0_26 = arith.constant 0 : index
      %c0_27 = arith.constant 0 : index
      %52 = vector.load %arg6[%c0_26, %c0_27] : memref<8x1xf32, #tpu.memory_space<vmem>>, vector<8x1xf32>
      %c0_28 = arith.constant 0 : index
      %c0_29 = arith.constant 0 : index
      %53 = vector.load %arg7[%c0_28, %c0_29] : memref<1x8xf32, #tpu.memory_space<vmem>>, vector<1x8xf32>
      %54 = tpu.transpose %53, [1, 0] : vector<1x8xf32> -> vector<8x1xf32>
      %cst_30 = arith.constant 2.000000e+00 : f32
      %55 = vector.broadcast %cst_30 : f32 to vector<8x1xf32>
      %56 = arith.mulf %55, %54 : vector<8x1xf32>
      %57 = arith.subf %56, %52 : vector<8x1xf32>
      %58 = math.log %57 : vector<8x1xf32>
      %cst_31 = arith.constant 5.000000e-01 : f32
      %59 = vector.broadcast %cst_31 : f32 to vector<8x1xf32>
      %60 = arith.mulf %59, %58 : vector<8x1xf32>
      %c0_32 = arith.constant 0 : index
      %c0_33 = arith.constant 0 : index
      %61 = vector.load %arg8[%c0_32, %c0_33] : memref<1x1xf32, #tpu.memory_space<vmem>>, vector<1x1xf32>
      %62 = vector.shape_cast %60 : vector<8x1xf32> to vector<1x8x1xf32>
      %cst_34 = arith.constant dense<0.000000e+00> : vector<1xf32>
      %63 = vector.multi_reduction <add>, %62, %cst_34 [1, 2] : vector<1x8x1xf32> to vector<1xf32>
      %64 = vector.shape_cast %63 : vector<1xf32> to vector<1x1x1xf32>
      %65 = vector.extract %64[0, 0, 0] : f32 from vector<1x1x1xf32>
      %66 = vector.broadcast %65 : f32 to vector<1x1xf32>
      %67 = arith.addf %61, %66 : vector<1x1xf32>
      %cst_35 = arith.constant 1.250000e-01 : f32
      %68 = vector.broadcast %cst_35 : f32 to vector<1x1xf32>
      %69 = arith.mulf %67, %68 : vector<1x1xf32>
      %c0_36 = arith.constant 0 : index
      %c0_37 = arith.constant 0 : index
      %70 = vector.load %arg4[%c0_36, %c0_37] : memref<1x1xf32, #tpu.memory_space<vmem>>, vector<1x1xf32>
      tpu.vector_store %arg4[%c0_36, %c0_37], %69 {strides = array<i32>} : memref<1x1xf32, #tpu.memory_space<vmem>>, vector<1x1xf32>,
    } else {
    }
    return
  }
  func.func @transform_0(%arg0: i32) -> (i32, i32) {
    %c0_i32 = arith.constant 0 : i32
    %c0_i32_0 = arith.constant 0 : i32
    return %arg0, %c0_i32 : i32, i32
  }
  func.func @transform_2(%arg0: i32) -> (i32, i32) {
    %c0_i32 = arith.constant 0 : i32
    %c0_i32_0 = arith.constant 0 : i32
    return %arg0, %c0_i32 : i32, i32
  }
  func.func @transform_3(%arg0: i32) -> (i32, i32) {
    %c0_i32 = arith.constant 0 : i32
    %c0_i32_0 = arith.constant 0 : i32
    %c0_i32_1 = arith.constant 0 : i32
    return %c0_i32, %c0_i32_0 : i32, i32
  }
}

</mosaic_0001>

<llo_original>
// kernel: tpu_custom_call.1
$region0: #{tpu_custom_call.1}
  #allocation0 [shape = 'u32[]', space=smem, size = 0x4, offset = 0x4, fixed_abs, tag = 'smem constant byte address 0x4 - core index']
  #allocation1 [shape = 'u32[144,128]{1,0:T(1,128)}', space=vmem, size = 0x12000, scoped, tag = 'internal scratch']
  #allocation2 [shape = 'f32[8,32]{1,0:T(8,128)}', space=vmem, size = 0x1000, scoped, tag = 'scratch operand']
  #allocation3 [shape = 'f32[8,1]{1,0:T(8,128)}', space=vmem, size = 0x1000, scoped, tag = 'scratch operand']
  #allocation4 [shape = 'f32[1,8]{1,0:T(1,128)}', space=vmem, size = 0x200, scoped, tag = 'scratch operand']
  #allocation5 [shape = 'f32[1,1]{1,0:T(1,128)}', space=vmem, size = 0x200, scoped, tag = 'scratch operand']
  #allocation6 [shape = 's32[1]{0}', space=sflag, size = 0x4, scoped, tag = 'scratch operand']
  #allocation13 [shape = 's32[]', space=sflag, size = 0x4, offset = 0, fixed_abs, tag = 'sflag constant byte address 0x0 - dummy sync flag']
  #allocation14 [shape = 's32[]', space=sflag, size = 0x4, offset = 0, fixed_abs, tag = 'sflag constant byte address 0x0 - dummy sync flag']
  #allocation15 [shape = 'u32[]', space=smem, size = 0x4, offset = 0x44, fixed_abs, tag = 'smem constant byte address 0x44 - assertion arg 0']
  #allocation16 [shape = 'u32[]', space=smem, size = 0x4, offset = 0x48, fixed_abs, tag = 'smem constant byte address 0x48 - assertion arg 1']
  %s0 = inlined_call_operand.hbm [shape: f32[8,32], index: 0, kind: input, shape index: {}]
  %s1 = inlined_call_operand.hbm [shape: f32[8,32], index: 1, kind: input, shape index: {}]
  %s2 = inlined_call_operand.hbm [shape: f32[8,32], index: 2, kind: input, shape index: {}]
  %s3 = inlined_call_operand.hbm [shape: f32[1,1], index: 3, kind: output, shape index: {}]
  %s4 = sld [smem:[#allocation0]]
  $region38: #{tpu_custom_call.1} parent=0
    _
  %s6 = ssub.s32 1, %s4
  %s7 = scalar_select 0, %s6, %s4
  $region1: #{tpu_custom_call.1} parent=0
    #allocation7 [shape = 'u8[4096]{0}', space=vmem, size = 0x1000, scoped, tag = 'input window, operand 0, single buffered']
    #allocation8 [shape = 's32[1]{0}', space=sflag, size = 0x4, scoped, tag = 'scoped memory for tpu_custom_call.1']
    #allocation9 [shape = 's32[1]{0}', space=sflag, size = 0x4, scoped, tag = 'scoped memory for tpu_custom_call.1']
    #allocation10 [shape = 'u8[4096]{0}', space=vmem, size = 0x1000, scoped, tag = 'input window, operand 2, single buffered']
    #allocation11 [shape = 's32[1]{0}', space=sflag, size = 0x4, scoped, tag = 'scoped memory for tpu_custom_call.1']
    #allocation12 [shape = 'u8[512]{0}', space=vmem, size = 0x400, scoped, tag = 'output window, operand 0, single buffered']
    %8 = vsyncpa [#allocation8], 0
    %9 = vsyncpa [#allocation11], 0
    %10 = vsyncpa [#allocation9], 0
    // Predicated region
    $region2: #{tpu_custom_call.1} parent=1 // pred_check
      _
    $region3: #{tpu_custom_call.1} parent=1 // pred_check_branch
      %12 = sbr.rel (0) target = $region5
    $region4: #{tpu_custom_call.1} parent=1 // pred_region
      %s14 = ssub.s32 128, 128
      %15 = vsyncadd [#allocation8], %s14
      %s17 = sshll.u32 [#allocation7], 4
      %s18 = int_to_ptr.vmem [resolvable:$true] %s17
      %20 = dma.hbm_to_vmem [thread:$0]  %s0, 128, %s18, [#allocation8]
    $region5: #{tpu_custom_call.1} parent=1 // pred_fallthru
      _
    // Predicated region
    $region6: #{tpu_custom_call.1} parent=1 // pred_check
      _
    $region7: #{tpu_custom_call.1} parent=1 // pred_check_branch
      %22 = sbr.rel (0) target = $region9
    $region8: #{tpu_custom_call.1} parent=1 // pred_region
      %s24 = ssub.s32 128, 128
      %25 = vsyncadd [#allocation11], %s24
      %s27 = sshll.u32 [#allocation10], 4
      %s28 = int_to_ptr.vmem [resolvable:$true] %s27
      %30 = dma.hbm_to_vmem [thread:$0]  %s2, 128, %s28, [#allocation11]
    $region9: #{tpu_custom_call.1} parent=1 // pred_fallthru
      _
    // Predicated region
    $region10: #{tpu_custom_call.1} parent=1 // pred_check
      _
    $region11: #{tpu_custom_call.1} parent=1 // pred_check_branch
      %32 = sbr.rel (0) target = $region13
    $region12: #{tpu_custom_call.1} parent=1 // pred_region
      %33 = dma.done [#allocation8], 128
    $region13: #{tpu_custom_call.1} parent=1 // pred_fallthru
      _
    // Predicated region
    $region14: #{tpu_custom_call.1} parent=1 // pred_check
      _
    $region15: #{tpu_custom_call.1} parent=1 // pred_check_branch
      %35 = sbr.rel (0) target = $region17
    $region16: #{tpu_custom_call.1} parent=1 // pred_region
      %36 = dma.done [#allocation11], 128
    $region17: #{tpu_custom_call.1} parent=1 // pred_fallthru
      _
    %p37 = scmp.eq.s32.totalorder 0, 0
    // Predicated region
    $region18: #{tpu_custom_call.1} parent=1 // pred_check
      %p38 = pneg %p37
    $region19: #{tpu_custom_call.1} parent=1 // pred_check_branch
      %40 = sbr.rel (%p38) target = $region21
    $region20: #{tpu_custom_call.1} parent=1 // pred_region
      // Predicated region
      $region22: #{tpu_custom_call.1} parent=20 // pred_check
        _
      $region23: #{tpu_custom_call.1} parent=20 // pred_check_branch
        %42 = sbr.rel target = $region25
      $region24: #{tpu_custom_call.1} parent=20 // pred_region
        %43 = sst [smem:[#allocation15]] [#allocation14]
        %44 = sst [smem:[#allocation16]] [#allocation13]
      $region25: #{tpu_custom_call.1} parent=20 // pred_fallthru
        _
      %46 = shalt.err (0)
      %s48 = sshll.u32 [#allocation2], 4
      %s49 = int_to_ptr.vmem [resolvable:$true] %s48
      %51 = dma.hbm_to_vmem [thread:$0]  %s1, 128, %s49, [#allocation6]
      %s52 = smul.u32 8, 1
      %s53 = sshll.u32 %s52, 4
      %54 = dma.done [#allocation6], %s53
      %vm55 = vcmask 57344
      %56 = vst.msk [vmem:[#allocation4] sm:$0x1] %vm55, 0.0
      %vm57 = vcmask 0
      %58 = vst.msk [vmem:[#allocation5] sm:$0x1] %vm57, 0.0
    $region21: #{tpu_custom_call.1} parent=1 // pred_fallthru
      _
    %v59 = vld [vmem:[#allocation7] sm:$0xff]
    %v60 = vmul.f32 %v59, %v59
    %vm61 = vcmask 261120
    %v62 = vsel %vm61, %v60, 0.0
    %63 = vadd.xlane.f32.xlu0 %v62
    %v64 = vpop.xlane.xlu0 %63
    %v65 = vmax.f32 %v64, 1e-24
    %v66 = vrsqrt.pop %v65
    %v67 = vmul.f32 %v66, 2.0
    %v68 = vmul.f32 %v59, %v67
    %v69 = vld [vmem:[#allocation2] sm:$0xff]
    %v71 = vsel %vm61, %v68, 0
    %v74 = vsel %vm61, %v69, 0
    %76 = vmatprep.subr.mxu0 0.0
    %77 = vmatpush1.xpose.msra.mxu0 %v74
    %78 = vmatprep.subr.mxu0 0.0
    %79 = vmatpush1.xpose.msra.mxu0 0.0
    %80 = vmatprep.subr.mxu0 0.0
    %81 = vmatpush1.xpose.msra.mxu0 0.0
    %82 = vmatprep.subr.mxu0 0.0
    %83 = vmatpush1.xpose.msra.mxu0 0.0
    %84 = vmatprep.subr.mxu0 0.0
    %85 = vmatpush1.xpose.msra.mxu0 0.0
    %86 = vmatprep.subr.mxu0 0.0
    %87 = vmatpush1.xpose.msra.mxu0 0.0
    %88 = vmatprep.subr.mxu0 0.0
    %89 = vmatpush1.xpose.msra.mxu0 0.0
    %90 = vmatprep.subr.mxu0 0.0
    %91 = vmatpush1.xpose.msra.mxu0 0.0
    %92 = vmatprep.subr.mxu0 0.0
    %93 = vmatpush1.xpose.msra.mxu0 0.0
    %94 = vmatprep.subr.mxu0 0.0
    %95 = vmatpush1.xpose.msra.mxu0 0.0
    %96 = vmatprep.subr.mxu0 0.0
    %97 = vmatpush1.xpose.msra.mxu0 0.0
    %98 = vmatprep.subr.mxu0 0.0
    %99 = vmatpush1.xpose.msra.mxu0 0.0
    %100 = vmatprep.subr.mxu0 0.0
    %101 = vmatpush1.xpose.msra.mxu0 0.0
    %102 = vmatprep.subr.mxu0 0.0
    %103 = vmatpush1.xpose.msra.mxu0 0.0
    %104 = vmatprep.subr.mxu0 0.0
    %105 = vmatpush1.xpose.msra.mxu0 0.0
    %106 = vmatprep.subr.mxu0 0.0
    %107 = vmatpush1.xpose.msra.mxu0 0.0
    %108 = vmatprep.subr.mxu0 0.0
    %109 = vmatpush1.xpose.msra.mxu0 0.0
    %110 = vmatprep.subr.mxu0 0.0
    %111 = vmatpush1.xpose.msra.mxu0 0.0
    %112 = vmatprep.subr.mxu0 0.0
    %113 = vmatpush1.xpose.msra.mxu0 0.0
    %114 = vmatprep.subr.mxu0 0.0
    %115 = vmatpush1.xpose.msra.mxu0 0.0
    %116 = vmatprep.subr.mxu0 0.0
    %117 = vmatpush1.xpose.msra.mxu0 0.0
    %118 = vmatprep.subr.mxu0 0.0
    %119 = vmatpush1.xpose.msra.mxu0 0.0
    %120 = vmatprep.subr.mxu0 0.0
    %121 = vmatpush1.xpose.msra.mxu0 0.0
    %122 = vmatprep.subr.mxu0 0.0
    %123 = vmatpush1.xpose.msra.mxu0 0.0
    %124 = vmatprep.subr.mxu0 0.0
    %125 = vmatpush1.xpose.msra.mxu0 0.0
    %126 = vmatprep.subr.mxu0 0.0
    %127 = vmatpush1.xpose.msra.mxu0 0.0
    %128 = vmatprep.subr.mxu0 0.0
    %129 = vmatpush1.xpose.msra.mxu0 0.0
    %130 = vmatprep.subr.mxu0 0.0
    %131 = vmatpush1.xpose.msra.mxu0 0.0
    %132 = vmatprep.subr.mxu0 0.0
    %133 = vmatpush1.xpose.msra.mxu0 0.0
    %134 = vmatprep.subr.mxu0 0.0
    %135 = vmatpush1.xpose.msra.mxu0 0.0
    %136 = vmatprep.subr.mxu0 0.0
    %137 = vmatpush1.xpose.msra.mxu0 0.0
    %138 = vmatprep.subr.mxu0 0.0
    %139 = vmatpush1.xpose.msra.mxu0 0.0
    %140 = vmatprep.mubr.f32.mxu0 0.0
    %141 = vmatmul.mubr.f32.gmra.mrb[0].mxu0 %v71
    %v142 = vpop.f32.mrb[0].mxu0
    %v143 = vadd.f32 0.0, %v142
    %v144 = vpop.f32.mrb[0].mxu0
    %145 = vdwg.mxu0
    %v146 = vmul.f32 %v143, 1.442695
    %v147 = vpow.pop %v146
    %vm148 = vcmask 64512
    %v149 = vsel %vm148, %v147, 0.0
    %150 = vadd.xlane.f32.xlu0 %v149
    %v151 = vpop.xlane.xlu0 %150
    %v152 = vld [vmem:[#allocation4] sm:$0x1]
    %v153 = vrot.slane %v149, 4
    %v154 = vadd.f32 %v149, %v153
    %v155 = vrot.slane %v154, 2
    %v156 = vadd.f32 %v154, %v155
    %v157 = vrot.slane %v156, 1
    %v158 = vadd.f32 %v156, %v157
    %v159 = vadd.f32 %v152, %v158
    %vm160 = vcmask 57344
    %161 = vst.msk [vmem:[#allocation4] sm:$0x1] %vm160, %v159
    %v162 = vld [vmem:[#allocation10] sm:$0xff]
    %v163 = vmul.f32 %v68, %v162
    %v164 = vsel %vm61, %v163, 0.0
    %165 = vadd.xlane.f32.xlu0 %v164
    %v166 = vpop.xlane.xlu0 %165
    %v167 = vmul.f32 %v166, 1.442695
    %v168 = vpow.pop %v167
    %s169 = smul.u32 0, 8
    %s170 = scalar_lea.vmem [#allocation3], %s169
    %vm171 = vcmask 7168
    %172 = vst.msk [vmem:[%s170] sm:$0xff] %vm171, %v168
    %v173 = vmul.f32 %v151, 2.0
    %v174 = vsub.f32 %v173, %v168
    %v175 = vlog2.pop %v174
    %v176 = vmul.f32 %v175, 0.6931472
    %v177 = vmul.f32 %v176, 0.5
    %v178 = vlog2.pop %v168
    %v179 = vmul.f32 %v178, 0.6931472
    %v180 = vsub.f32 %v177, %v179
    %v181 = vld [vmem:[#allocation5] sm:$0x1]
    %v182 = vsel %vm171, %v180, 0.0
    %183 = vadd.xlane.f32.xlu0 %v182
    %v184 = vpop.xlane.xlu0 %183
    %v185 = vrot.slane %v184, 4
    %v186 = vadd.f32 %v184, %v185
    %v187 = vrot.slane %v186, 2
    %v188 = vadd.f32 %v186, %v187
    %v189 = vrot.slane %v188, 1
    %v190 = vadd.f32 %v188, %v189
    %s191 = vtos %v190
    %v192 = vstv %s191
    %v193 = vadd.f32 %v181, %v192
    %vm194 = vcmask 0
    %195 = vst.msk [vmem:[#allocation5] sm:$0x1] %vm194, %v193
    // Predicated region
    $region26: #{tpu_custom_call.1} parent=1 // pred_check
      %p196 = pneg %p37
    $region27: #{tpu_custom_call.1} parent=1 // pred_check_branch
      %198 = sbr.rel (%p196) target = $region29
    $region28: #{tpu_custom_call.1} parent=1 // pred_region
      %v199 = vld [vmem:[#allocation3] sm:$0xff]
      %v200 = vld [vmem:[#allocation4] sm:$0x1]
      %201 = vxpose.xlu0.b32.start [1/16] %v200, 128
      %202 = vxpose.xlu0.b32.cont [2/16] 0.0, 128
      %203 = vxpose.xlu0.b32.cont [3/16] 0.0, 128
      %204 = vxpose.xlu0.b32.cont [4/16] 0.0, 128
      %205 = vxpose.xlu0.b32.cont [5/16] 0.0, 128
      %206 = vxpose.xlu0.b32.cont [6/16] 0.0, 128
      %207 = vxpose.xlu0.b32.cont [7/16] 0.0, 128
      %208 = vxpose.xlu0.b32.cont [8/16] 0.0, 128
      %209 = vxpose.xlu0.b32.cont [9/16] 0.0, 128
      %210 = vxpose.xlu0.b32.cont [10/16] 0.0, 128
      %211 = vxpose.xlu0.b32.cont [11/16] 0.0, 128
      %212 = vxpose.xlu0.b32.cont [12/16] 0.0, 128
      %213 = vxpose.xlu0.b32.cont [13/16] 0.0, 128
      %214 = vxpose.xlu0.b32.cont [14/16] 0.0, 128
      %215 = vxpose.xlu0.b32.cont [15/16] 0.0, 128
      %216 = vxpose.xlu0.b32.end [16/16] 0.0, 128
      %v217 = vpop.trf.xlu0
      %v218 = vpop.trf.xlu0
      %v219 = vpop.trf.xlu0
      %v220 = vpop.trf.xlu0
      %v221 = vpop.trf.xlu0
      %v222 = vpop.trf.xlu0
      %v223 = vpop.trf.xlu0
      %v224 = vpop.trf.xlu0
      %v225 = vpop.trf.xlu0
      %v226 = vpop.trf.xlu0
      %v227 = vpop.trf.xlu0
      %v228 = vpop.trf.xlu0
      %v229 = vpop.trf.xlu0
      %v230 = vpop.trf.xlu0
      %v231 = vpop.trf.xlu0
      %v232 = vpop.trf.xlu0
      %v233 = vmul.f32 %v217, 2.0
      %v234 = vsub.f32 %v233, %v199
      %v235 = vlog2.pop %v234
      %v236 = vmul.f32 %v235, 0.6931472
      %v237 = vmul.f32 %v236, 0.5
      %v238 = vld [vmem:[#allocation5] sm:$0x1]
      %v239 = vsel %vm171, %v237, 0.0
      %240 = vadd.xlane.f32.xlu0 %v239
      %v241 = vpop.xlane.xlu0 %240
      %v242 = vrot.slane %v241, 4
      %v243 = vadd.f32 %v241, %v242
      %v244 = vrot.slane %v243, 2
      %v245 = vadd.f32 %v243, %v244
      %v246 = vrot.slane %v245, 1
      %v247 = vadd.f32 %v245, %v246
      %s248 = vtos %v247
      %v249 = vstv %s248
      %v250 = vadd.f32 %v238, %v249
      %v251 = vmul.f32 %v250, 0.125
      %252 = vst.msk [vmem:[#allocation12] sm:$0x1] %vm194, %v251
    $region29: #{tpu_custom_call.1} parent=1 // pred_fallthru
      _
    // Predicated region
    $region30: #{tpu_custom_call.1} parent=1 // pred_check
      _
    $region31: #{tpu_custom_call.1} parent=1 // pred_check_branch
      %254 = sbr.rel (0) target = $region33
    $region32: #{tpu_custom_call.1} parent=1 // pred_region
      %s256 = ssub.s32 16, 16
      %257 = vsyncadd [#allocation9], %s256
      %s259 = sshll.u32 [#allocation12], 4
      %s260 = int_to_ptr.vmem [resolvable:$true] %s259
      %262 = dma.vmem_to_hbm [thread:$0]  %s260, 16, %s3, [#allocation9]
    $region33: #{tpu_custom_call.1} parent=1 // pred_fallthru
      _
    // Predicated region
    $region34: #{tpu_custom_call.1} parent=1 // pred_check
      _
    $region35: #{tpu_custom_call.1} parent=1 // pred_check_branch
      %264 = sbr.rel (0) target = $region37
    $region36: #{tpu_custom_call.1} parent=1 // pred_region
      %265 = dma.done [#allocation9], 16
    $region37: #{tpu_custom_call.1} parent=1 // pred_fallthru
      _
    %266 = vsyncpa [#allocation8], 1
    %267 = vsyncpa [#allocation11], 1
    %268 = vsyncpa [#allocation9], 1
  %269 = vsyncmov [#allocation6]
  %s270 = vpop.sfrf %269
  %p271 = scmp.eq.s32.totalorder %s270, 0
  %p272 = pneg %p271
  %274 = shalt.err (%p272)

</llo_original>
